<compile_context>
chip_gen: v7x
topology: tpu7x:2x2x1
jax: 0.10.0
libtpu: 0.0.40
codegen_flags: <defaults>
</compile_context>

<pallas_src>
import jax
import jax.numpy as jnp
from jax.experimental import pallas as pl
from jax.experimental.pallas import tpu as pltpu


def _make_fused_kernel(num_layers, has_act_attr):
    """Build a fused ActionNet kernel.

    Ref order: src_oh [E,N] bf16, dst_oh_t [N,E] bf16, x [N,D0] f32,
               env_edge_attr [E,D0] f32, (act_edge_attr [E,H] f32 if has_act_attr),
               (w1_i [D_in,D_out], w2_i [D_in,D_out], b_i [1,D_out]) * num_layers,
               out [N,D_last].
    """

    def kernel(*refs):
        src_ref, dst_t_ref, x_ref = refs[0], refs[1], refs[2]
        pos = 3
        env_ref = refs[pos]
        pos += 1
        act_ref = None
        if has_act_attr:
            act_ref = refs[pos]
            pos += 1
        layer_refs = refs[pos:-1]
        o_ref = refs[-1]

        x = x_ref[...]                                        # [N, D0] f32, stays on-chip
        for i in range(num_layers):
            w1_ref, w2_ref, b_ref = layer_refs[3 * i:3 * i + 3]
            ea_ref = env_ref if i == 0 else act_ref           # same VMEM ref reused

            # Gather source node features: x[src] == one_hot(src) @ x.
            # bf16 selector -> f32 lazily, only at the point of use (exact 0/1 values).
            src_sel = src_ref[...].astype(jnp.float32)        # [E, N]
            gathered = jnp.dot(src_sel, x, preferred_element_type=jnp.float32)   # [E, D_in]
            # Elementwise message product stays in f32 (v5e VPU has no bf16 ALU).
            msg = gathered * ea_ref[...]                                          # [E, D_in]

            # Scatter-add into destination nodes: selector is pre-transposed [N, E]
            # in the wrapper, so this is a standard last-dim contraction -> pure MXU.
            dst_sel = dst_t_ref[...].astype(jnp.float32)      # [N, E]
            agg = jnp.dot(dst_sel, msg, preferred_element_type=jnp.float32)      # [N, D_in]

            # Linear(cat([x, agg], -1)) with weights pre-split at the call boundary.
            h = (jnp.dot(x, w1_ref[...], preferred_element_type=jnp.float32)
                 + jnp.dot(agg, w2_ref[...], preferred_element_type=jnp.float32)
                 + b_ref[...])                                                    # [N, D_out]

            if i < num_layers - 1:
                # dropout (inference identity) + activation (ReLU) between layers
                h = jnp.maximum(h, 0.0)
            x = h

        o_ref[...] = x

    return kernel


def action_net_forward(x, edge_index, env_edge_attr, act_edge_attr, params):
    """ActionNet.forward fused into one Pallas call. params: list of (w_t, b).

    w_t is the transposed nn.Linear weight, shape [2*D_in, D_out]; b is [D_out].
    """
    num_layers = len(params)
    n = x.shape[0]
    src = edge_index[0]
    dst = edge_index[1]
    e = src.shape[0]

    # Dense one-hot selectors in bf16 (0/1 is exact in bf16 -> half the DMA bytes).
    # Destination selector is built already transposed ([N, E]) so the in-kernel
    # scatter is a plain last-dim contraction (no XLU transpose on the hot path).
    src_oh = jax.nn.one_hot(src, n, dtype=jnp.bfloat16)                        # [E, N]
    dst_oh_t = (jnp.arange(n, dtype=dst.dtype)[:, None]
                == dst[None, :]).astype(jnp.bfloat16)                          # [N, E]

    d_out_final = params[-1][0].shape[1]
    has_act_attr = num_layers > 1

    full = lambda shape: pl.BlockSpec(shape, lambda: tuple(0 for _ in shape))

    # act_edge_attr is passed exactly once and reused for layers 1..L-1 inside
    # the kernel (no duplicated HBM->VMEM DMAs / VMEM residency).
    in_arrays = [src_oh, dst_oh_t, x, env_edge_attr]
    if has_act_attr:
        in_arrays.append(act_edge_attr)

    flops = 0
    for (w_t, b) in params:
        d_in = w_t.shape[0] // 2
        d_out = w_t.shape[1]
        # Pre-split weights at the call boundary (robust for any d_in, never a
        # tile-boundary-crossing slice inside the kernel).
        w1 = w_t[:d_in, :]
        w2 = w_t[d_in:, :]
        b2 = b.reshape(1, -1)
        in_arrays += [w1, w2, b2]
        flops += (2 * e * n * d_in          # gather matmul
                  + e * d_in                # edge-attr multiply
                  + 2 * n * e * d_in        # scatter matmul
                  + 2 * n * (2 * d_in) * d_out + n * d_out)  # linear + bias

    in_specs = [full(a.shape) for a in in_arrays]
    bytes_accessed = (sum(int(a.size) * a.dtype.itemsize for a in in_arrays)
                      + n * d_out_final * 4)

    kernel = _make_fused_kernel(num_layers, has_act_attr)
    return pl.pallas_call(
        kernel,
        out_shape=jax.ShapeDtypeStruct((n, d_out_final), jnp.float32),
        grid=(),
        in_specs=in_specs,
        out_specs=full((n, d_out_final)),
        cost_estimate=pl.CostEstimate(flops=int(flops), transcendentals=0,
                                      bytes_accessed=int(bytes_accessed)),
        compiler_params=pltpu.CompilerParams(vmem_limit_bytes=32 * 1024 * 1024),
    )(*in_arrays)


def _reference_forward(x, edge_index, env_edge_attr, act_edge_attr, params):
    """Pure-JAX reference matching PyTorch semantics (eval mode, ReLU activation)."""
    num_layers = len(params)
    src, dst = edge_index[0], edge_index[1]
    edge_attrs = [env_edge_attr] + [act_edge_attr] * (num_layers - 1)
    for idx, (edge_attr, (w_t, b)) in enumerate(zip(edge_attrs, params)):
        msg = x[src] * edge_attr
        agg = jnp.zeros_like(x).at[dst].add(msg)
        h = jnp.concatenate([x, agg], axis=-1) @ w_t + b
        if idx < num_layers - 1:
            h = jax.nn.relu(h)
        x = h
    return x


if __name__ == "__main__":
    # Small config consistent with the module's __init__.
    NUM_LAYERS = 3
    INPUT_DIM = 8
    HIDDEN_DIM = 32
    OUTPUT_DIM = 8
    N_NODES = 8
    N_EDGES = 16

    key = jax.random.PRNGKey(0)
    k_x, k_src, k_dst, k_env, k_act, k_w = jax.random.split(key, 6)

    x = jax.random.normal(k_x, (N_NODES, INPUT_DIM), dtype=jnp.float32)
    src = jax.random.randint(k_src, (N_EDGES,), 0, N_NODES)
    dst = jax.random.randint(k_dst, (N_EDGES,), 0, N_NODES)
    edge_index = jnp.stack([src, dst], axis=0)                        # [2, E]
    env_edge_attr = jax.random.normal(k_env, (N_EDGES, INPUT_DIM), dtype=jnp.float32)
    act_edge_attr = jax.random.normal(k_act, (N_EDGES, HIDDEN_DIM), dtype=jnp.float32)

    # Deterministic parameter init (shapes from WeightedGNNConv.__init__).
    layer_dims = []
    for i in range(NUM_LAYERS):
        d_in = INPUT_DIM if i == 0 else HIDDEN_DIM
        d_out = HIDDEN_DIM if i < NUM_LAYERS - 1 else OUTPUT_DIM
        layer_dims.append((d_in, d_out))

    params = []
    wkeys = jax.random.split(k_w, NUM_LAYERS * 2)
    for i, (d_in, d_out) in enumerate(layer_dims):
        scale = 1.0 / jnp.sqrt(2.0 * d_in)
        w_t = jax.random.uniform(wkeys[2 * i], (2 * d_in, d_out),
                                 minval=-scale, maxval=scale, dtype=jnp.float32)
        b = jax.random.uniform(wkeys[2 * i + 1], (d_out,),
                               minval=-scale, maxval=scale, dtype=jnp.float32)
        params.append((w_t, b))

    out = action_net_forward(x, edge_index, env_edge_attr, act_edge_attr, params)
    out = jax.block_until_ready(out)

    ref = _reference_forward(x, edge_index, env_edge_attr, act_edge_attr, params)
    assert out.shape == (N_NODES, OUTPUT_DIM)
    assert jnp.allclose(out, ref, atol=1e-4, rtol=1e-4), "mismatch vs reference"

    print("KERNEL_OK")
</pallas_src>

<mosaic_0001>
module attributes {stable_mosaic.version = 11 : i64} {
  func.func @kernel(%arg0: memref<16x8xbf16, #tpu.memory_space<vmem>>, %arg1: memref<8x16xbf16, #tpu.memory_space<vmem>>, %arg2: memref<8x8xf32, #tpu.memory_space<vmem>>, %arg3: memref<16x8xf32, #tpu.memory_space<vmem>>, %arg4: memref<16x32xf32, #tpu.memory_space<vmem>>, %arg5: memref<8x32xf32, #tpu.memory_space<vmem>>, %arg6: memref<8x32xf32, #tpu.memory_space<vmem>>, %arg7: memref<1x32xf32, #tpu.memory_space<vmem>>, %arg8: memref<32x32xf32, #tpu.memory_space<vmem>>, %arg9: memref<32x32xf32, #tpu.memory_space<vmem>>, %arg10: memref<1x32xf32, #tpu.memory_space<vmem>>, %arg11: memref<32x8xf32, #tpu.memory_space<vmem>>, %arg12: memref<32x8xf32, #tpu.memory_space<vmem>>, %arg13: memref<1x8xf32, #tpu.memory_space<vmem>>, %arg14: memref<8x8xf32, #tpu.memory_space<vmem>>) attributes {dimension_semantics = [], scalar_prefetch = 0 : i64, scratch_operands = 0 : i64, tpu.core_type = #tpu.core_type<tc>} {
    %c0 = arith.constant 0 : index
    %c0_0 = arith.constant 0 : index
    %0 = vector.load %arg2[%c0, %c0_0] : memref<8x8xf32, #tpu.memory_space<vmem>>, vector<8x8xf32>
    %c0_1 = arith.constant 0 : index
    %c0_2 = arith.constant 0 : index
    %1 = vector.load %arg0[%c0_1, %c0_2] : memref<16x8xbf16, #tpu.memory_space<vmem>>, vector<16x8xbf16>
    %2 = arith.extf %1 : vector<16x8xbf16> to vector<16x8xf32>
    %cst = arith.constant dense<0.000000e+00> : vector<16x8xf32>
    %3 = tpu.matmul %2, %0, %cst {dimension_numbers = #tpu.dot_dimension_numbers<[1], [0], [0], [1], [0, 0, 1, 1], [], []>} : vector<16x8xf32>, vector<8x8xf32>, vector<16x8xf32> -> vector<16x8xf32>
    %c0_3 = arith.constant 0 : index
    %c0_4 = arith.constant 0 : index
    %4 = vector.load %arg3[%c0_3, %c0_4] : memref<16x8xf32, #tpu.memory_space<vmem>>, vector<16x8xf32>
    %5 = arith.mulf %3, %4 : vector<16x8xf32>
    %c0_5 = arith.constant 0 : index
    %c0_6 = arith.constant 0 : index
    %6 = vector.load %arg1[%c0_5, %c0_6] : memref<8x16xbf16, #tpu.memory_space<vmem>>, vector<8x16xbf16>
    %7 = arith.extf %6 : vector<8x16xbf16> to vector<8x16xf32>
    %cst_7 = arith.constant dense<0.000000e+00> : vector<8x8xf32>
    %8 = tpu.matmul %7, %5, %cst_7 {dimension_numbers = #tpu.dot_dimension_numbers<[1], [0], [0], [1], [0, 0, 1, 1], [], []>} : vector<8x16xf32>, vector<16x8xf32>, vector<8x8xf32> -> vector<8x8xf32>
    %c0_8 = arith.constant 0 : index
    %c0_9 = arith.constant 0 : index
    %9 = vector.load %arg5[%c0_8, %c0_9] : memref<8x32xf32, #tpu.memory_space<vmem>>, vector<8x32xf32>
    %cst_10 = arith.constant dense<0.000000e+00> : vector<8x32xf32>
    %10 = tpu.matmul %0, %9, %cst_10 {dimension_numbers = #tpu.dot_dimension_numbers<[1], [0], [0], [1], [0, 0, 1, 1], [], []>} : vector<8x8xf32>, vector<8x32xf32>, vector<8x32xf32> -> vector<8x32xf32>
    %c0_11 = arith.constant 0 : index
    %c0_12 = arith.constant 0 : index
    %11 = vector.load %arg6[%c0_11, %c0_12] : memref<8x32xf32, #tpu.memory_space<vmem>>, vector<8x32xf32>
    %cst_13 = arith.constant dense<0.000000e+00> : vector<8x32xf32>
    %12 = tpu.matmul %8, %11, %cst_13 {dimension_numbers = #tpu.dot_dimension_numbers<[1], [0], [0], [1], [0, 0, 1, 1], [], []>} : vector<8x8xf32>, vector<8x32xf32>, vector<8x32xf32> -> vector<8x32xf32>
    %13 = arith.addf %10, %12 : vector<8x32xf32>
    %c0_14 = arith.constant 0 : index
    %c0_15 = arith.constant 0 : index
    %14 = vector.load %arg7[%c0_14, %c0_15] : memref<1x32xf32, #tpu.memory_space<vmem>>, vector<1x32xf32>
    %15 = vector.broadcast %14 : vector<1x32xf32> to vector<8x32xf32>
    %16 = arith.addf %13, %15 : vector<8x32xf32>
    %cst_16 = arith.constant 0.000000e+00 : f32
    %17 = vector.broadcast %cst_16 : f32 to vector<8x32xf32>
    %18 = arith.maximumf %16, %17 : vector<8x32xf32>
    %c0_17 = arith.constant 0 : index
    %c0_18 = arith.constant 0 : index
    %19 = vector.load %arg0[%c0_17, %c0_18] : memref<16x8xbf16, #tpu.memory_space<vmem>>, vector<16x8xbf16>
    %20 = arith.extf %19 : vector<16x8xbf16> to vector<16x8xf32>
    %cst_19 = arith.constant dense<0.000000e+00> : vector<16x32xf32>
    %21 = tpu.matmul %20, %18, %cst_19 {dimension_numbers = #tpu.dot_dimension_numbers<[1], [0], [0], [1], [0, 0, 1, 1], [], []>} : vector<16x8xf32>, vector<8x32xf32>, vector<16x32xf32> -> vector<16x32xf32>
    %c0_20 = arith.constant 0 : index
    %c0_21 = arith.constant 0 : index
    %22 = vector.load %arg4[%c0_20, %c0_21] : memref<16x32xf32, #tpu.memory_space<vmem>>, vector<16x32xf32>
    %23 = arith.mulf %21, %22 : vector<16x32xf32>
    %c0_22 = arith.constant 0 : index
    %c0_23 = arith.constant 0 : index
    %24 = vector.load %arg1[%c0_22, %c0_23] : memref<8x16xbf16, #tpu.memory_space<vmem>>, vector<8x16xbf16>
    %25 = arith.extf %24 : vector<8x16xbf16> to vector<8x16xf32>
    %cst_24 = arith.constant dense<0.000000e+00> : vector<8x32xf32>
    %26 = tpu.matmul %25, %23, %cst_24 {dimension_numbers = #tpu.dot_dimension_numbers<[1], [0], [0], [1], [0, 0, 1, 1], [], []>} : vector<8x16xf32>, vector<16x32xf32>, vector<8x32xf32> -> vector<8x32xf32>
    %c0_25 = arith.constant 0 : index
    %c0_26 = arith.constant 0 : index
    %27 = vector.load %arg8[%c0_25, %c0_26] : memref<32x32xf32, #tpu.memory_space<vmem>>, vector<32x32xf32>
    %cst_27 = arith.constant dense<0.000000e+00> : vector<8x32xf32>
    %28 = tpu.matmul %18, %27, %cst_27 {dimension_numbers = #tpu.dot_dimension_numbers<[1], [0], [0], [1], [0, 0, 1, 1], [], []>} : vector<8x32xf32>, vector<32x32xf32>, vector<8x32xf32> -> vector<8x32xf32>
    %c0_28 = arith.constant 0 : index
    %c0_29 = arith.constant 0 : index
    %29 = vector.load %arg9[%c0_28, %c0_29] : memref<32x32xf32, #tpu.memory_space<vmem>>, vector<32x32xf32>
    %cst_30 = arith.constant dense<0.000000e+00> : vector<8x32xf32>
    %30 = tpu.matmul %26, %29, %cst_30 {dimension_numbers = #tpu.dot_dimension_numbers<[1], [0], [0], [1], [0, 0, 1, 1], [], []>} : vector<8x32xf32>, vector<32x32xf32>, vector<8x32xf32> -> vector<8x32xf32>
    %31 = arith.addf %28, %30 : vector<8x32xf32>
    %c0_31 = arith.constant 0 : index
    %c0_32 = arith.constant 0 : index
    %32 = vector.load %arg10[%c0_31, %c0_32] : memref<1x32xf32, #tpu.memory_space<vmem>>, vector<1x32xf32>
    %33 = vector.broadcast %32 : vector<1x32xf32> to vector<8x32xf32>
    %34 = arith.addf %31, %33 : vector<8x32xf32>
    %cst_33 = arith.constant 0.000000e+00 : f32
    %35 = vector.broadcast %cst_33 : f32 to vector<8x32xf32>
    %36 = arith.maximumf %34, %35 : vector<8x32xf32>
    %c0_34 = arith.constant 0 : index
    %c0_35 = arith.constant 0 : index
    %37 = vector.load %arg0[%c0_34, %c0_35] : memref<16x8xbf16, #tpu.memory_space<vmem>>, vector<16x8xbf16>
    %38 = arith.extf %37 : vector<16x8xbf16> to vector<16x8xf32>
    %cst_36 = arith.constant dense<0.000000e+00> : vector<16x32xf32>
    %39 = tpu.matmul %38, %36, %cst_36 {dimension_numbers = #tpu.dot_dimension_numbers<[1], [0], [0], [1], [0, 0, 1, 1], [], []>} : vector<16x8xf32>, vector<8x32xf32>, vector<16x32xf32> -> vector<16x32xf32>
    %c0_37 = arith.constant 0 : index
    %c0_38 = arith.constant 0 : index
    %40 = vector.load %arg4[%c0_37, %c0_38] : memref<16x32xf32, #tpu.memory_space<vmem>>, vector<16x32xf32>
    %41 = arith.mulf %39, %40 : vector<16x32xf32>
    %c0_39 = arith.constant 0 : index
    %c0_40 = arith.constant 0 : index
    %42 = vector.load %arg1[%c0_39, %c0_40] : memref<8x16xbf16, #tpu.memory_space<vmem>>, vector<8x16xbf16>
    %43 = arith.extf %42 : vector<8x16xbf16> to vector<8x16xf32>
    %cst_41 = arith.constant dense<0.000000e+00> : vector<8x32xf32>
    %44 = tpu.matmul %43, %41, %cst_41 {dimension_numbers = #tpu.dot_dimension_numbers<[1], [0], [0], [1], [0, 0, 1, 1], [], []>} : vector<8x16xf32>, vector<16x32xf32>, vector<8x32xf32> -> vector<8x32xf32>
    %c0_42 = arith.constant 0 : index
    %c0_43 = arith.constant 0 : index
    %45 = vector.load %arg11[%c0_42, %c0_43] : memref<32x8xf32, #tpu.memory_space<vmem>>, vector<32x8xf32>
    %cst_44 = arith.constant dense<0.000000e+00> : vector<8x8xf32>
    %46 = tpu.matmul %36, %45, %cst_44 {dimension_numbers = #tpu.dot_dimension_numbers<[1], [0], [0], [1], [0, 0, 1, 1], [], []>} : vector<8x32xf32>, vector<32x8xf32>, vector<8x8xf32> -> vector<8x8xf32>
    %c0_45 = arith.constant 0 : index
    %c0_46 = arith.constant 0 : index
    %47 = vector.load %arg12[%c0_45, %c0_46] : memref<32x8xf32, #tpu.memory_space<vmem>>, vector<32x8xf32>
    %cst_47 = arith.constant dense<0.000000e+00> : vector<8x8xf32>
    %48 = tpu.matmul %44, %47, %cst_47 {dimension_numbers = #tpu.dot_dimension_numbers<[1], [0], [0], [1], [0, 0, 1, 1], [], []>} : vector<8x32xf32>, vector<32x8xf32>, vector<8x8xf32> -> vector<8x8xf32>
    %49 = arith.addf %46, %48 : vector<8x8xf32>
    %c0_48 = arith.constant 0 : index
    %c0_49 = arith.constant 0 : index
    %50 = vector.load %arg13[%c0_48, %c0_49] : memref<1x8xf32, #tpu.memory_space<vmem>>, vector<1x8xf32>
    %51 = vector.broadcast %50 : vector<1x8xf32> to vector<8x8xf32>
    %52 = arith.addf %49, %51 : vector<8x8xf32>
    %c0_50 = arith.constant 0 : index
    %c0_51 = arith.constant 0 : index
    %53 = vector.load %arg14[%c0_50, %c0_51] : memref<8x8xf32, #tpu.memory_space<vmem>>, vector<8x8xf32>
    tpu.vector_store %arg14[%c0_50, %c0_51], %52 {strides = array<i32>} : memref<8x8xf32, #tpu.memory_space<vmem>>, vector<8x8xf32>,
    return
  }
}

</mosaic_0001>

<llo_original>
// kernel: tpu_custom_call.1
$region0: #{tpu_custom_call.1}
  #allocation0 [shape = 'u32[]', space=smem, size = 0x4, offset = 0x4, fixed_abs, tag = 'smem constant byte address 0x4 - core index']
  #allocation1 [shape = 'u32[144,128]{1,0:T(1,128)}', space=vmem, size = 0x12000, scoped, tag = 'internal scratch']
  %s0 = inlined_call_operand.vmem [shape: bf16[16,8], index: 0, kind: input, shape index: {}]
  %s1 = inlined_call_operand.hbm [shape: bf16[8,16], index: 1, kind: input, shape index: {}]
  %s2 = inlined_call_operand.vmem [shape: f32[8,8], index: 2, kind: input, shape index: {}]
  %s3 = inlined_call_operand.vmem [shape: f32[16,8], index: 3, kind: input, shape index: {}]
  %s4 = inlined_call_operand.vmem [shape: f32[16,32], index: 4, kind: input, shape index: {}]
  %s5 = inlined_call_operand.vmem [shape: f32[8,32], index: 5, kind: input, shape index: {}]
  %s6 = inlined_call_operand.vmem [shape: f32[8,32], index: 6, kind: input, shape index: {}]
  %s7 = inlined_call_operand.vmem [shape: f32[1,32], index: 7, kind: input, shape index: {}]
  %s8 = inlined_call_operand.vmem [shape: f32[32,32], index: 8, kind: input, shape index: {}]
  %s9 = inlined_call_operand.vmem [shape: f32[32,32], index: 9, kind: input, shape index: {}]
  %s10 = inlined_call_operand.vmem [shape: f32[1,32], index: 10, kind: input, shape index: {}]
  %s11 = inlined_call_operand.vmem [shape: f32[32,8], index: 11, kind: input, shape index: {}]
  %s12 = inlined_call_operand.vmem [shape: f32[32,8], index: 12, kind: input, shape index: {}]
  %s13 = inlined_call_operand.vmem [shape: f32[1,8], index: 13, kind: input, shape index: {}]
  %s14 = inlined_call_operand.hbm [shape: f32[8,8], index: 14, kind: output, shape index: {}]
  %s15 = sld [smem:[#allocation0]]
  $region70: #{tpu_custom_call.1} parent=0
    _
  %s17 = ssub.s32 1, %s15
  %s18 = scalar_select 0, %s17, %s15
  $region1: #{tpu_custom_call.1} parent=0
    #allocation2 [shape = 'u8[2048]{0}', space=vmem, size = 0x800, scoped, tag = 'input window, operand 1, single buffered']
    #allocation3 [shape = 's32[1]{0}', space=sflag, size = 0x4, scoped, tag = 'scoped memory for tpu_custom_call.1']
    #allocation4 [shape = 's32[1]{0}', space=sflag, size = 0x4, scoped, tag = 'scoped memory for tpu_custom_call.1']
    #allocation5 [shape = 'u8[4096]{0}', space=vmem, size = 0x1000, scoped, tag = 'output window, operand 0, single buffered']
    %19 = vsyncpa [#allocation3], 0
    %20 = vsyncpa [#allocation4], 0
    // Predicated region
    $region2: #{tpu_custom_call.1} parent=1 // pred_check
      _
    $region3: #{tpu_custom_call.1} parent=1 // pred_check_branch
      %22 = sbr.rel (0) target = $region5
    $region4: #{tpu_custom_call.1} parent=1 // pred_region
      _
    $region5: #{tpu_custom_call.1} parent=1 // pred_fallthru
      _
    // Predicated region
    $region6: #{tpu_custom_call.1} parent=1 // pred_check
      _
    $region7: #{tpu_custom_call.1} parent=1 // pred_check_branch
      %24 = sbr.rel (0) target = $region9
    $region8: #{tpu_custom_call.1} parent=1 // pred_region
      %s26 = ssub.s32 64, 64
      %27 = vsyncadd [#allocation3], %s26
      %s29 = sshll.u32 [#allocation2], 4
      %s30 = int_to_ptr.vmem [resolvable:$true] %s29
      %32 = dma.hbm_to_vmem [thread:$0]  %s1, 64, %s30, [#allocation3]
    $region9: #{tpu_custom_call.1} parent=1 // pred_fallthru
      _
    // Predicated region
    $region10: #{tpu_custom_call.1} parent=1 // pred_check
      _
    $region11: #{tpu_custom_call.1} parent=1 // pred_check_branch
      %34 = sbr.rel (0) target = $region13
    $region12: #{tpu_custom_call.1} parent=1 // pred_region
      _
    $region13: #{tpu_custom_call.1} parent=1 // pred_fallthru
      _
    // Predicated region
    $region14: #{tpu_custom_call.1} parent=1 // pred_check
      _
    $region15: #{tpu_custom_call.1} parent=1 // pred_check_branch
      %36 = sbr.rel (0) target = $region17
    $region16: #{tpu_custom_call.1} parent=1 // pred_region
      _
    $region17: #{tpu_custom_call.1} parent=1 // pred_fallthru
      _
    // Predicated region
    $region18: #{tpu_custom_call.1} parent=1 // pred_check
      _
    $region19: #{tpu_custom_call.1} parent=1 // pred_check_branch
      %38 = sbr.rel (0) target = $region21
    $region20: #{tpu_custom_call.1} parent=1 // pred_region
      _
    $region21: #{tpu_custom_call.1} parent=1 // pred_fallthru
      _
    // Predicated region
    $region22: #{tpu_custom_call.1} parent=1 // pred_check
      _
    $region23: #{tpu_custom_call.1} parent=1 // pred_check_branch
      %40 = sbr.rel (0) target = $region25
    $region24: #{tpu_custom_call.1} parent=1 // pred_region
      _
    $region25: #{tpu_custom_call.1} parent=1 // pred_fallthru
      _
    // Predicated region
    $region26: #{tpu_custom_call.1} parent=1 // pred_check
      _
    $region27: #{tpu_custom_call.1} parent=1 // pred_check_branch
      %42 = sbr.rel (0) target = $region29
    $region28: #{tpu_custom_call.1} parent=1 // pred_region
      _
    $region29: #{tpu_custom_call.1} parent=1 // pred_fallthru
      _
    // Predicated region
    $region30: #{tpu_custom_call.1} parent=1 // pred_check
      _
    $region31: #{tpu_custom_call.1} parent=1 // pred_check_branch
      %44 = sbr.rel (0) target = $region33
    $region32: #{tpu_custom_call.1} parent=1 // pred_region
      _
    $region33: #{tpu_custom_call.1} parent=1 // pred_fallthru
      _
    // Predicated region
    $region34: #{tpu_custom_call.1} parent=1 // pred_check
      _
    $region35: #{tpu_custom_call.1} parent=1 // pred_check_branch
      %46 = sbr.rel (0) target = $region37
    $region36: #{tpu_custom_call.1} parent=1 // pred_region
      _
    $region37: #{tpu_custom_call.1} parent=1 // pred_fallthru
      _
    // Predicated region
    $region38: #{tpu_custom_call.1} parent=1 // pred_check
      _
    $region39: #{tpu_custom_call.1} parent=1 // pred_check_branch
      %48 = sbr.rel (0) target = $region41
    $region40: #{tpu_custom_call.1} parent=1 // pred_region
      _
    $region41: #{tpu_custom_call.1} parent=1 // pred_fallthru
      _
    // Predicated region
    $region42: #{tpu_custom_call.1} parent=1 // pred_check
      _
    $region43: #{tpu_custom_call.1} parent=1 // pred_check_branch
      %50 = sbr.rel (0) target = $region45
    $region44: #{tpu_custom_call.1} parent=1 // pred_region
      _
    $region45: #{tpu_custom_call.1} parent=1 // pred_fallthru
      _
    // Predicated region
    $region46: #{tpu_custom_call.1} parent=1 // pred_check
      _
    $region47: #{tpu_custom_call.1} parent=1 // pred_check_branch
      %52 = sbr.rel (0) target = $region49
    $region48: #{tpu_custom_call.1} parent=1 // pred_region
      _
    $region49: #{tpu_custom_call.1} parent=1 // pred_fallthru
      _
    // Predicated region
    $region50: #{tpu_custom_call.1} parent=1 // pred_check
      _
    $region51: #{tpu_custom_call.1} parent=1 // pred_check_branch
      %54 = sbr.rel (0) target = $region53
    $region52: #{tpu_custom_call.1} parent=1 // pred_region
      _
    $region53: #{tpu_custom_call.1} parent=1 // pred_fallthru
      _
    // Predicated region
    $region54: #{tpu_custom_call.1} parent=1 // pred_check
      _
    $region55: #{tpu_custom_call.1} parent=1 // pred_check_branch
      %56 = sbr.rel (0) target = $region57
    $region56: #{tpu_custom_call.1} parent=1 // pred_region
      _
    $region57: #{tpu_custom_call.1} parent=1 // pred_fallthru
      _
    // Predicated region
    $region58: #{tpu_custom_call.1} parent=1 // pred_check
      _
    $region59: #{tpu_custom_call.1} parent=1 // pred_check_branch
      %58 = sbr.rel (0) target = $region61
    $region60: #{tpu_custom_call.1} parent=1 // pred_region
      %59 = dma.done [#allocation3], 64
    $region61: #{tpu_custom_call.1} parent=1 // pred_fallthru
      _
    %v60 = vld [vmem:[%s2] sm:$0xff]
    %v61 = vld [vmem:[%s0] sm:$0xf]
    %v62 = vld [vmem:[%s0 + $0x4] sm:$0xf]
    %v63 = vunpack.c.l.bf16 %v61
    %v64 = vunpack.c.l.bf16 %v62
    %vm65 = vcmask 64512
    %v67 = vsel %vm65, %v63, 0
    %v70 = vsel %vm65, %v64, 0
    %72 = vmatprep.subr.mxu0 0.0
    %73 = vmatpush1.msra.mxu0 %v60
    %74 = vmatprep.subr.mxu0 0.0
    %75 = vmatpush1.msra.mxu0 0.0
    %76 = vmatprep.subr.mxu0 0.0
    %77 = vmatpush1.msra.mxu0 0.0
    %78 = vmatprep.subr.mxu0 0.0
    %79 = vmatpush1.msra.mxu0 0.0
    %80 = vmatprep.subr.mxu0 0.0
    %81 = vmatpush1.msra.mxu0 0.0
    %82 = vmatprep.subr.mxu0 0.0
    %83 = vmatpush1.msra.mxu0 0.0
    %84 = vmatprep.subr.mxu0 0.0
    %85 = vmatpush1.msra.mxu0 0.0
    %86 = vmatprep.subr.mxu0 0.0
    %87 = vmatpush1.msra.mxu0 0.0
    %88 = vmatprep.subr.mxu0 0.0
    %89 = vmatpush1.msra.mxu0 0.0
    %90 = vmatprep.subr.mxu0 0.0
    %91 = vmatpush1.msra.mxu0 0.0
    %92 = vmatprep.subr.mxu0 0.0
    %93 = vmatpush1.msra.mxu0 0.0
    %94 = vmatprep.subr.mxu0 0.0
    %95 = vmatpush1.msra.mxu0 0.0
    %96 = vmatprep.subr.mxu0 0.0
    %97 = vmatpush1.msra.mxu0 0.0
    %98 = vmatprep.subr.mxu0 0.0
    %99 = vmatpush1.msra.mxu0 0.0
    %100 = vmatprep.subr.mxu0 0.0
    %101 = vmatpush1.msra.mxu0 0.0
    %102 = vmatprep.subr.mxu0 0.0
    %103 = vmatpush1.msra.mxu0 0.0
    %104 = vmatprep.subr.mxu0 0.0
    %105 = vmatpush1.msra.mxu0 0.0
    %106 = vmatprep.subr.mxu0 0.0
    %107 = vmatpush1.msra.mxu0 0.0
    %108 = vmatprep.subr.mxu0 0.0
    %109 = vmatpush1.msra.mxu0 0.0
    %110 = vmatprep.subr.mxu0 0.0
    %111 = vmatpush1.msra.mxu0 0.0
    %112 = vmatprep.subr.mxu0 0.0
    %113 = vmatpush1.msra.mxu0 0.0
    %114 = vmatprep.subr.mxu0 0.0
    %115 = vmatpush1.msra.mxu0 0.0
    %116 = vmatprep.subr.mxu0 0.0
    %117 = vmatpush1.msra.mxu0 0.0
    %118 = vmatprep.subr.mxu0 0.0
    %119 = vmatpush1.msra.mxu0 0.0
    %120 = vmatprep.subr.mxu0 0.0
    %121 = vmatpush1.msra.mxu0 0.0
    %122 = vmatprep.subr.mxu0 0.0
    %123 = vmatpush1.msra.mxu0 0.0
    %124 = vmatprep.subr.mxu0 0.0
    %125 = vmatpush1.msra.mxu0 0.0
    %126 = vmatprep.subr.mxu0 0.0
    %127 = vmatpush1.msra.mxu0 0.0
    %128 = vmatprep.subr.mxu0 0.0
    %129 = vmatpush1.msra.mxu0 0.0
    %130 = vmatprep.subr.mxu0 0.0
    %131 = vmatpush1.msra.mxu0 0.0
    %132 = vmatprep.subr.mxu0 0.0
    %133 = vmatpush1.msra.mxu0 0.0
    %134 = vmatprep.subr.mxu0 0.0
    %135 = vmatpush1.msra.mxu0 0.0
    %136 = vmatprep.mubr.f32.mxu0 0.0
    %137 = vmatmul.mubr.f32.gmra.mrb[0].mxu0 %v67
    %v138 = vpop.f32.mrb[0].mxu0
    %v139 = vadd.f32 0.0, %v138
    %v140 = vpop.f32.mrb[0].mxu0
    %141 = vmatprep.mubr.f32.mxu0 0.0
    %142 = vmatmul.mubr.f32.gmra.mrb[0].mxu0 %v70
    %v143 = vpop.f32.mrb[0].mxu0
    %v144 = vadd.f32 0.0, %v143
    %v145 = vpop.f32.mrb[0].mxu0
    %146 = vdwg.mxu0
    %v147 = vld [vmem:[%s3] sm:$0xff]
    %v148 = vld [vmem:[%s3 + $0x8] sm:$0xff]
    %v149 = vmul.f32 %v139, %v147
    %v150 = vmul.f32 %v144, %v148
    %v151 = vld [vmem:[#allocation2] sm:$0xf]
    %v152 = vunpack.c.l.bf16 %v151
    %vm153 = vcmask 130048
    %v155 = vsel %vm153, %v152, 0
    %157 = vmatprep.subr.mxu0 0.0
    %158 = vmatpush1.msra.mxu0 %v149
    %159 = vmatprep.subr.mxu0 0.0
    %160 = vmatpush1.msra.mxu0 %v150
    %161 = vmatprep.subr.mxu0 0.0
    %162 = vmatpush1.msra.mxu0 0.0
    %163 = vmatprep.subr.mxu0 0.0
    %164 = vmatpush1.msra.mxu0 0.0
    %165 = vmatprep.subr.mxu0 0.0
    %166 = vmatpush1.msra.mxu0 0.0
    %167 = vmatprep.subr.mxu0 0.0
    %168 = vmatpush1.msra.mxu0 0.0
    %169 = vmatprep.subr.mxu0 0.0
    %170 = vmatpush1.msra.mxu0 0.0
    %171 = vmatprep.subr.mxu0 0.0
    %172 = vmatpush1.msra.mxu0 0.0
    %173 = vmatprep.subr.mxu0 0.0
    %174 = vmatpush1.msra.mxu0 0.0
    %175 = vmatprep.subr.mxu0 0.0
    %176 = vmatpush1.msra.mxu0 0.0
    %177 = vmatprep.subr.mxu0 0.0
    %178 = vmatpush1.msra.mxu0 0.0
    %179 = vmatprep.subr.mxu0 0.0
    %180 = vmatpush1.msra.mxu0 0.0
    %181 = vmatprep.subr.mxu0 0.0
    %182 = vmatpush1.msra.mxu0 0.0
    %183 = vmatprep.subr.mxu0 0.0
    %184 = vmatpush1.msra.mxu0 0.0
    %185 = vmatprep.subr.mxu0 0.0
    %186 = vmatpush1.msra.mxu0 0.0
    %187 = vmatprep.subr.mxu0 0.0
    %188 = vmatpush1.msra.mxu0 0.0
    %189 = vmatprep.subr.mxu0 0.0
    %190 = vmatpush1.msra.mxu0 0.0
    %191 = vmatprep.subr.mxu0 0.0
    %192 = vmatpush1.msra.mxu0 0.0
    %193 = vmatprep.subr.mxu0 0.0
    %194 = vmatpush1.msra.mxu0 0.0
    %195 = vmatprep.subr.mxu0 0.0
    %196 = vmatpush1.msra.mxu0 0.0
    %197 = vmatprep.subr.mxu0 0.0
    %198 = vmatpush1.msra.mxu0 0.0
    %199 = vmatprep.subr.mxu0 0.0
    %200 = vmatpush1.msra.mxu0 0.0
    %201 = vmatprep.subr.mxu0 0.0
    %202 = vmatpush1.msra.mxu0 0.0
    %203 = vmatprep.subr.mxu0 0.0
    %204 = vmatpush1.msra.mxu0 0.0
    %205 = vmatprep.subr.mxu0 0.0
    %206 = vmatpush1.msra.mxu0 0.0
    %207 = vmatprep.subr.mxu0 0.0
    %208 = vmatpush1.msra.mxu0 0.0
    %209 = vmatprep.subr.mxu0 0.0
    %210 = vmatpush1.msra.mxu0 0.0
    %211 = vmatprep.subr.mxu0 0.0
    %212 = vmatpush1.msra.mxu0 0.0
    %213 = vmatprep.subr.mxu0 0.0
    %214 = vmatpush1.msra.mxu0 0.0
    %215 = vmatprep.subr.mxu0 0.0
    %216 = vmatpush1.msra.mxu0 0.0
    %217 = vmatprep.subr.mxu0 0.0
    %218 = vmatpush1.msra.mxu0 0.0
    %219 = vmatprep.subr.mxu0 0.0
    %220 = vmatpush1.msra.mxu0 0.0
    %221 = vmatprep.mubr.f32.mxu0 0.0
    %222 = vmatmul.mubr.f32.gmra.mrb[0].mxu0 %v155
    %v223 = vpop.f32.mrb[0].mxu0
    %v224 = vadd.f32 0.0, %v223
    %v225 = vpop.f32.mrb[0].mxu0
    %226 = vdwg.mxu0
    %v227 = vld [vmem:[%s5] sm:$0xff]
    %v228 = vld [vmem:[%s6] sm:$0xff]
    %v230 = vsel %vm65, %v224, 0
    %232 = vmatprep.subr.mxu0 0.0
    %233 = vmatpush1.msra.mxu0 %v228
    %234 = vmatprep.subr.mxu0 0.0
    %235 = vmatpush1.msra.mxu0 0.0
    %236 = vmatprep.subr.mxu0 0.0
    %237 = vmatpush1.msra.mxu0 0.0
    %238 = vmatprep.subr.mxu0 0.0
    %239 = vmatpush1.msra.mxu0 0.0
    %240 = vmatprep.subr.mxu0 0.0
    %241 = vmatpush1.msra.mxu0 0.0
    %242 = vmatprep.subr.mxu0 0.0
    %243 = vmatpush1.msra.mxu0 0.0
    %244 = vmatprep.subr.mxu0 0.0
    %245 = vmatpush1.msra.mxu0 0.0
    %246 = vmatprep.subr.mxu0 0.0
    %247 = vmatpush1.msra.mxu0 0.0
    %248 = vmatprep.subr.mxu0 0.0
    %249 = vmatpush1.msra.mxu0 0.0
    %250 = vmatprep.subr.mxu0 0.0
    %251 = vmatpush1.msra.mxu0 0.0
    %252 = vmatprep.subr.mxu0 0.0
    %253 = vmatpush1.msra.mxu0 0.0
    %254 = vmatprep.subr.mxu0 0.0
    %255 = vmatpush1.msra.mxu0 0.0
    %256 = vmatprep.subr.mxu0 0.0
    %257 = vmatpush1.msra.mxu0 0.0
    %258 = vmatprep.subr.mxu0 0.0
    %259 = vmatpush1.msra.mxu0 0.0
    %260 = vmatprep.subr.mxu0 0.0
    %261 = vmatpush1.msra.mxu0 0.0
    %262 = vmatprep.subr.mxu0 0.0
    %263 = vmatpush1.msra.mxu0 0.0
    %264 = vmatprep.subr.mxu0 0.0
    %265 = vmatpush1.msra.mxu0 0.0
    %266 = vmatprep.subr.mxu0 0.0
    %267 = vmatpush1.msra.mxu0 0.0
    %268 = vmatprep.subr.mxu0 0.0
    %269 = vmatpush1.msra.mxu0 0.0
    %270 = vmatprep.subr.mxu0 0.0
    %271 = vmatpush1.msra.mxu0 0.0
    %272 = vmatprep.subr.mxu0 0.0
    %273 = vmatpush1.msra.mxu0 0.0
    %274 = vmatprep.subr.mxu0 0.0
    %275 = vmatpush1.msra.mxu0 0.0
    %276 = vmatprep.subr.mxu0 0.0
    %277 = vmatpush1.msra.mxu0 0.0
    %278 = vmatprep.subr.mxu0 0.0
    %279 = vmatpush1.msra.mxu0 0.0
    %280 = vmatprep.subr.mxu0 0.0
    %281 = vmatpush1.msra.mxu0 0.0
    %282 = vmatprep.subr.mxu0 0.0
    %283 = vmatpush1.msra.mxu0 0.0
    %284 = vmatprep.subr.mxu0 0.0
    %285 = vmatpush1.msra.mxu0 0.0
    %286 = vmatprep.subr.mxu0 0.0
    %287 = vmatpush1.msra.mxu0 0.0
    %288 = vmatprep.subr.mxu0 0.0
    %289 = vmatpush1.msra.mxu0 0.0
    %290 = vmatprep.subr.mxu0 0.0
    %291 = vmatpush1.msra.mxu0 0.0
    %292 = vmatprep.subr.mxu0 0.0
    %293 = vmatpush1.msra.mxu0 0.0
    %294 = vmatprep.subr.mxu0 0.0
    %295 = vmatpush1.msra.mxu0 0.0
    %296 = vmatprep.mubr.f32.mxu0 0.0
    %297 = vmatmul.mubr.f32.gmra.mrb[0].mxu0 %v230
    %v298 = vpop.f32.mrb[0].mxu0
    %v299 = vadd.f32 0.0, %v298
    %v300 = vpop.f32.mrb[0].mxu0
    %301 = vdwg.mxu0
    %v303 = vsel %vm65, %v60, 0
    %305 = vmatprep.subr.mxu0 0.0
    %306 = vmatpush1.msra.mxu0 %v227
    %307 = vmatprep.subr.mxu0 0.0
    %308 = vmatpush1.msra.mxu0 0.0
    %309 = vmatprep.subr.mxu0 0.0
    %310 = vmatpush1.msra.mxu0 0.0
    %311 = vmatprep.subr.mxu0 0.0
    %312 = vmatpush1.msra.mxu0 0.0
    %313 = vmatprep.subr.mxu0 0.0
    %314 = vmatpush1.msra.mxu0 0.0
    %315 = vmatprep.subr.mxu0 0.0
    %316 = vmatpush1.msra.mxu0 0.0
    %317 = vmatprep.subr.mxu0 0.0
    %318 = vmatpush1.msra.mxu0 0.0
    %319 = vmatprep.subr.mxu0 0.0
    %320 = vmatpush1.msra.mxu0 0.0
    %321 = vmatprep.subr.mxu0 0.0
    %322 = vmatpush1.msra.mxu0 0.0
    %323 = vmatprep.subr.mxu0 0.0
    %324 = vmatpush1.msra.mxu0 0.0
    %325 = vmatprep.subr.mxu0 0.0
    %326 = vmatpush1.msra.mxu0 0.0
    %327 = vmatprep.subr.mxu0 0.0
    %328 = vmatpush1.msra.mxu0 0.0
    %329 = vmatprep.subr.mxu0 0.0
    %330 = vmatpush1.msra.mxu0 0.0
    %331 = vmatprep.subr.mxu0 0.0
    %332 = vmatpush1.msra.mxu0 0.0
    %333 = vmatprep.subr.mxu0 0.0
    %334 = vmatpush1.msra.mxu0 0.0
    %335 = vmatprep.subr.mxu0 0.0
    %336 = vmatpush1.msra.mxu0 0.0
    %337 = vmatprep.subr.mxu0 0.0
    %338 = vmatpush1.msra.mxu0 0.0
    %339 = vmatprep.subr.mxu0 0.0
    %340 = vmatpush1.msra.mxu0 0.0
    %341 = vmatprep.subr.mxu0 0.0
    %342 = vmatpush1.msra.mxu0 0.0
    %343 = vmatprep.subr.mxu0 0.0
    %344 = vmatpush1.msra.mxu0 0.0
    %345 = vmatprep.subr.mxu0 0.0
    %346 = vmatpush1.msra.mxu0 0.0
    %347 = vmatprep.subr.mxu0 0.0
    %348 = vmatpush1.msra.mxu0 0.0
    %349 = vmatprep.subr.mxu0 0.0
    %350 = vmatpush1.msra.mxu0 0.0
    %351 = vmatprep.subr.mxu0 0.0
    %352 = vmatpush1.msra.mxu0 0.0
    %353 = vmatprep.subr.mxu0 0.0
    %354 = vmatpush1.msra.mxu0 0.0
    %355 = vmatprep.subr.mxu0 0.0
    %356 = vmatpush1.msra.mxu0 0.0
    %357 = vmatprep.subr.mxu0 0.0
    %358 = vmatpush1.msra.mxu0 0.0
    %359 = vmatprep.subr.mxu0 0.0
    %360 = vmatpush1.msra.mxu0 0.0
    %361 = vmatprep.subr.mxu0 0.0
    %362 = vmatpush1.msra.mxu0 0.0
    %363 = vmatprep.subr.mxu0 0.0
    %364 = vmatpush1.msra.mxu0 0.0
    %365 = vmatprep.subr.mxu0 0.0
    %366 = vmatpush1.msra.mxu0 0.0
    %367 = vmatprep.subr.mxu0 0.0
    %368 = vmatpush1.msra.mxu0 0.0
    %369 = vmatprep.mubr.f32.mxu0 0.0
    %370 = vmatmul.mubr.f32.gmra.mrb[0].mxu0 %v303
    %v371 = vpop.f32.mrb[0].mxu0
    %v372 = vadd.f32 %v299, %v371
    %v373 = vpop.f32.mrb[0].mxu0
    %374 = vdwg.mxu0
    %v375 = vld [vmem:[%s7] sm:$0x1]
    %v377 = vlaneseq
    %v378 = vshrl.u32 %v377, 7
    %v379 = vsub.s32 0, %v378
    %v380 = vrot.slane %v375, %v379
    %v382 = vadd.f32 %v372, %v380
    %v383 = vmax.f32 %v382, 0.0
    %384 = vmatprep.subr.mxu0 0.0
    %385 = vmatpush1.msra.mxu0 %v383
    %386 = vmatprep.subr.mxu0 0.0
    %387 = vmatpush1.msra.mxu0 0.0
    %388 = vmatprep.subr.mxu0 0.0
    %389 = vmatpush1.msra.mxu0 0.0
    %390 = vmatprep.subr.mxu0 0.0
    %391 = vmatpush1.msra.mxu0 0.0
    %392 = vmatprep.subr.mxu0 0.0
    %393 = vmatpush1.msra.mxu0 0.0
    %394 = vmatprep.subr.mxu0 0.0
    %395 = vmatpush1.msra.mxu0 0.0
    %396 = vmatprep.subr.mxu0 0.0
    %397 = vmatpush1.msra.mxu0 0.0
    %398 = vmatprep.subr.mxu0 0.0
    %399 = vmatpush1.msra.mxu0 0.0
    %400 = vmatprep.subr.mxu0 0.0
    %401 = vmatpush1.msra.mxu0 0.0
    %402 = vmatprep.subr.mxu0 0.0
    %403 = vmatpush1.msra.mxu0 0.0
    %404 = vmatprep.subr.mxu0 0.0
    %405 = vmatpush1.msra.mxu0 0.0
    %406 = vmatprep.subr.mxu0 0.0
    %407 = vmatpush1.msra.mxu0 0.0
    %408 = vmatprep.subr.mxu0 0.0
    %409 = vmatpush1.msra.mxu0 0.0
    %410 = vmatprep.subr.mxu0 0.0
    %411 = vmatpush1.msra.mxu0 0.0
    %412 = vmatprep.subr.mxu0 0.0
    %413 = vmatpush1.msra.mxu0 0.0
    %414 = vmatprep.subr.mxu0 0.0
    %415 = vmatpush1.msra.mxu0 0.0
    %416 = vmatprep.subr.mxu0 0.0
    %417 = vmatpush1.msra.mxu0 0.0
    %418 = vmatprep.subr.mxu0 0.0
    %419 = vmatpush1.msra.mxu0 0.0
    %420 = vmatprep.subr.mxu0 0.0
    %421 = vmatpush1.msra.mxu0 0.0
    %422 = vmatprep.subr.mxu0 0.0
    %423 = vmatpush1.msra.mxu0 0.0
    %424 = vmatprep.subr.mxu0 0.0
    %425 = vmatpush1.msra.mxu0 0.0
    %426 = vmatprep.subr.mxu0 0.0
    %427 = vmatpush1.msra.mxu0 0.0
    %428 = vmatprep.subr.mxu0 0.0
    %429 = vmatpush1.msra.mxu0 0.0
    %430 = vmatprep.subr.mxu0 0.0
    %431 = vmatpush1.msra.mxu0 0.0
    %432 = vmatprep.subr.mxu0 0.0
    %433 = vmatpush1.msra.mxu0 0.0
    %434 = vmatprep.subr.mxu0 0.0
    %435 = vmatpush1.msra.mxu0 0.0
    %436 = vmatprep.subr.mxu0 0.0
    %437 = vmatpush1.msra.mxu0 0.0
    %438 = vmatprep.subr.mxu0 0.0
    %439 = vmatpush1.msra.mxu0 0.0
    %440 = vmatprep.subr.mxu0 0.0
    %441 = vmatpush1.msra.mxu0 0.0
    %442 = vmatprep.subr.mxu0 0.0
    %443 = vmatpush1.msra.mxu0 0.0
    %444 = vmatprep.subr.mxu0 0.0
    %445 = vmatpush1.msra.mxu0 0.0
    %446 = vmatprep.subr.mxu0 0.0
    %447 = vmatpush1.msra.mxu0 0.0
    %448 = vmatprep.mubr.f32.mxu0 0.0
    %449 = vmatmul.mubr.f32.gmra.mrb[0].mxu0 %v67
    %v450 = vpop.f32.mrb[0].mxu0
    %v451 = vadd.f32 0.0, %v450
    %v452 = vpop.f32.mrb[0].mxu0
    %453 = vmatprep.mubr.f32.mxu0 0.0
    %454 = vmatmul.mubr.f32.gmra.mrb[0].mxu0 %v70
    %v455 = vpop.f32.mrb[0].mxu0
    %v456 = vadd.f32 0.0, %v455
    %v457 = vpop.f32.mrb[0].mxu0
    %458 = vdwg.mxu0
    %v459 = vld [vmem:[%s4] sm:$0xff]
    %v460 = vld [vmem:[%s4 + $0x8] sm:$0xff]
    %v461 = vmul.f32 %v451, %v459
    %v462 = vmul.f32 %v456, %v460
    %463 = vmatprep.subr.mxu0 0.0
    %464 = vmatpush1.msra.mxu0 %v461
    %465 = vmatprep.subr.mxu0 0.0
    %466 = vmatpush1.msra.mxu0 %v462
    %467 = vmatprep.subr.mxu0 0.0
    %468 = vmatpush1.msra.mxu0 0.0
    %469 = vmatprep.subr.mxu0 0.0
    %470 = vmatpush1.msra.mxu0 0.0
    %471 = vmatprep.subr.mxu0 0.0
    %472 = vmatpush1.msra.mxu0 0.0
    %473 = vmatprep.subr.mxu0 0.0
    %474 = vmatpush1.msra.mxu0 0.0
    %475 = vmatprep.subr.mxu0 0.0
    %476 = vmatpush1.msra.mxu0 0.0
    %477 = vmatprep.subr.mxu0 0.0
    %478 = vmatpush1.msra.mxu0 0.0
    %479 = vmatprep.subr.mxu0 0.0
    %480 = vmatpush1.msra.mxu0 0.0
    %481 = vmatprep.subr.mxu0 0.0
    %482 = vmatpush1.msra.mxu0 0.0
    %483 = vmatprep.subr.mxu0 0.0
    %484 = vmatpush1.msra.mxu0 0.0
    %485 = vmatprep.subr.mxu0 0.0
    %486 = vmatpush1.msra.mxu0 0.0
    %487 = vmatprep.subr.mxu0 0.0
    %488 = vmatpush1.msra.mxu0 0.0
    %489 = vmatprep.subr.mxu0 0.0
    %490 = vmatpush1.msra.mxu0 0.0
    %491 = vmatprep.subr.mxu0 0.0
    %492 = vmatpush1.msra.mxu0 0.0
    %493 = vmatprep.subr.mxu0 0.0
    %494 = vmatpush1.msra.mxu0 0.0
    %495 = vmatprep.subr.mxu0 0.0
    %496 = vmatpush1.msra.mxu0 0.0
    %497 = vmatprep.subr.mxu0 0.0
    %498 = vmatpush1.msra.mxu0 0.0
    %499 = vmatprep.subr.mxu0 0.0
    %500 = vmatpush1.msra.mxu0 0.0
    %501 = vmatprep.subr.mxu0 0.0
    %502 = vmatpush1.msra.mxu0 0.0
    %503 = vmatprep.subr.mxu0 0.0
    %504 = vmatpush1.msra.mxu0 0.0
    %505 = vmatprep.subr.mxu0 0.0
    %506 = vmatpush1.msra.mxu0 0.0
    %507 = vmatprep.subr.mxu0 0.0
    %508 = vmatpush1.msra.mxu0 0.0
    %509 = vmatprep.subr.mxu0 0.0
    %510 = vmatpush1.msra.mxu0 0.0
    %511 = vmatprep.subr.mxu0 0.0
    %512 = vmatpush1.msra.mxu0 0.0
    %513 = vmatprep.subr.mxu0 0.0
    %514 = vmatpush1.msra.mxu0 0.0
    %515 = vmatprep.subr.mxu0 0.0
    %516 = vmatpush1.msra.mxu0 0.0
    %517 = vmatprep.subr.mxu0 0.0
    %518 = vmatpush1.msra.mxu0 0.0
    %519 = vmatprep.subr.mxu0 0.0
    %520 = vmatpush1.msra.mxu0 0.0
    %521 = vmatprep.subr.mxu0 0.0
    %522 = vmatpush1.msra.mxu0 0.0
    %523 = vmatprep.subr.mxu0 0.0
    %524 = vmatpush1.msra.mxu0 0.0
    %525 = vmatprep.subr.mxu0 0.0
    %526 = vmatpush1.msra.mxu0 0.0
    %527 = vmatprep.mubr.f32.mxu0 0.0
    %528 = vmatmul.mubr.f32.gmra.mrb[0].mxu0 %v155
    %v529 = vpop.f32.mrb[0].mxu0
    %v530 = vadd.f32 0.0, %v529
    %v531 = vpop.f32.mrb[0].mxu0
    %532 = vdwg.mxu0
    %v533 = vld [vmem:[%s8] sm:$0xff]
    %v534 = vld [vmem:[%s8 + $0x8] sm:$0xff]
    %v535 = vld [vmem:[%s8 + $0x10] sm:$0xff]
    %v536 = vld [vmem:[%s8 + $0x18] sm:$0xff]
    %v537 = vld [vmem:[%s9] sm:$0xff]
    %v538 = vld [vmem:[%s9 + $0x8] sm:$0xff]
    %v539 = vld [vmem:[%s9 + $0x10] sm:$0xff]
    %v540 = vld [vmem:[%s9 + $0x18] sm:$0xff]
    %vm541 = vcmask 261120
    %v543 = vsel %vm541, %v530, 0
    %545 = vmatprep.subr.mxu0 0.0
    %546 = vmatpush1.msra.mxu0 %v537
    %547 = vmatprep.subr.mxu0 0.0
    %548 = vmatpush1.msra.mxu0 %v538
    %549 = vmatprep.subr.mxu0 0.0
    %550 = vmatpush1.msra.mxu0 %v539
    %551 = vmatprep.subr.mxu0 0.0
    %552 = vmatpush1.msra.mxu0 %v540
    %553 = vmatprep.subr.mxu0 0.0
    %554 = vmatpush1.msra.mxu0 0.0
    %555 = vmatprep.subr.mxu0 0.0
    %556 = vmatpush1.msra.mxu0 0.0
    %557 = vmatprep.subr.mxu0 0.0
    %558 = vmatpush1.msra.mxu0 0.0
    %559 = vmatprep.subr.mxu0 0.0
    %560 = vmatpush1.msra.mxu0 0.0
    %561 = vmatprep.subr.mxu0 0.0
    %562 = vmatpush1.msra.mxu0 0.0
    %563 = vmatprep.subr.mxu0 0.0
    %564 = vmatpush1.msra.mxu0 0.0
    %565 = vmatprep.subr.mxu0 0.0
    %566 = vmatpush1.msra.mxu0 0.0
    %567 = vmatprep.subr.mxu0 0.0
    %568 = vmatpush1.msra.mxu0 0.0
    %569 = vmatprep.subr.mxu0 0.0
    %570 = vmatpush1.msra.mxu0 0.0
    %571 = vmatprep.subr.mxu0 0.0
    %572 = vmatpush1.msra.mxu0 0.0
    %573 = vmatprep.subr.mxu0 0.0
    %574 = vmatpush1.msra.mxu0 0.0
    %575 = vmatprep.subr.mxu0 0.0
    %576 = vmatpush1.msra.mxu0 0.0
    %577 = vmatprep.subr.mxu0 0.0
    %578 = vmatpush1.msra.mxu0 0.0
    %579 = vmatprep.subr.mxu0 0.0
    %580 = vmatpush1.msra.mxu0 0.0
    %581 = vmatprep.subr.mxu0 0.0
    %582 = vmatpush1.msra.mxu0 0.0
    %583 = vmatprep.subr.mxu0 0.0
    %584 = vmatpush1.msra.mxu0 0.0
    %585 = vmatprep.subr.mxu0 0.0
    %586 = vmatpush1.msra.mxu0 0.0
    %587 = vmatprep.subr.mxu0 0.0
    %588 = vmatpush1.msra.mxu0 0.0
    %589 = vmatprep.subr.mxu0 0.0
    %590 = vmatpush1.msra.mxu0 0.0
    %591 = vmatprep.subr.mxu0 0.0
    %592 = vmatpush1.msra.mxu0 0.0
    %593 = vmatprep.subr.mxu0 0.0
    %594 = vmatpush1.msra.mxu0 0.0
    %595 = vmatprep.subr.mxu0 0.0
    %596 = vmatpush1.msra.mxu0 0.0
    %597 = vmatprep.subr.mxu0 0.0
    %598 = vmatpush1.msra.mxu0 0.0
    %599 = vmatprep.subr.mxu0 0.0
    %600 = vmatpush1.msra.mxu0 0.0
    %601 = vmatprep.subr.mxu0 0.0
    %602 = vmatpush1.msra.mxu0 0.0
    %603 = vmatprep.subr.mxu0 0.0
    %604 = vmatpush1.msra.mxu0 0.0
    %605 = vmatprep.subr.mxu0 0.0
    %606 = vmatpush1.msra.mxu0 0.0
    %607 = vmatprep.subr.mxu0 0.0
    %608 = vmatpush1.msra.mxu0 0.0
    %609 = vmatprep.mubr.f32.mxu0 0.0
    %610 = vmatmul.mubr.f32.gmra.mrb[0].mxu0 %v543
    %v611 = vpop.f32.mrb[0].mxu0
    %v612 = vadd.f32 0.0, %v611
    %v613 = vpop.f32.mrb[0].mxu0
    %614 = vdwg.mxu0
    %v616 = vsel %vm541, %v383, 0
    %618 = vmatprep.subr.mxu0 0.0
    %619 = vmatpush1.msra.mxu0 %v533
    %620 = vmatprep.subr.mxu0 0.0
    %621 = vmatpush1.msra.mxu0 %v534
    %622 = vmatprep.subr.mxu0 0.0
    %623 = vmatpush1.msra.mxu0 %v535
    %624 = vmatprep.subr.mxu0 0.0
    %625 = vmatpush1.msra.mxu0 %v536
    %626 = vmatprep.subr.mxu0 0.0
    %627 = vmatpush1.msra.mxu0 0.0
    %628 = vmatprep.subr.mxu0 0.0
    %629 = vmatpush1.msra.mxu0 0.0
    %630 = vmatprep.subr.mxu0 0.0
    %631 = vmatpush1.msra.mxu0 0.0
    %632 = vmatprep.subr.mxu0 0.0
    %633 = vmatpush1.msra.mxu0 0.0
    %634 = vmatprep.subr.mxu0 0.0
    %635 = vmatpush1.msra.mxu0 0.0
    %636 = vmatprep.subr.mxu0 0.0
    %637 = vmatpush1.msra.mxu0 0.0
    %638 = vmatprep.subr.mxu0 0.0
    %639 = vmatpush1.msra.mxu0 0.0
    %640 = vmatprep.subr.mxu0 0.0
    %641 = vmatpush1.msra.mxu0 0.0
    %642 = vmatprep.subr.mxu0 0.0
    %643 = vmatpush1.msra.mxu0 0.0
    %644 = vmatprep.subr.mxu0 0.0
    %645 = vmatpush1.msra.mxu0 0.0
    %646 = vmatprep.subr.mxu0 0.0
    %647 = vmatpush1.msra.mxu0 0.0
    %648 = vmatprep.subr.mxu0 0.0
    %649 = vmatpush1.msra.mxu0 0.0
    %650 = vmatprep.subr.mxu0 0.0
    %651 = vmatpush1.msra.mxu0 0.0
    %652 = vmatprep.subr.mxu0 0.0
    %653 = vmatpush1.msra.mxu0 0.0
    %654 = vmatprep.subr.mxu0 0.0
    %655 = vmatpush1.msra.mxu0 0.0
    %656 = vmatprep.subr.mxu0 0.0
    %657 = vmatpush1.msra.mxu0 0.0
    %658 = vmatprep.subr.mxu0 0.0
    %659 = vmatpush1.msra.mxu0 0.0
    %660 = vmatprep.subr.mxu0 0.0
    %661 = vmatpush1.msra.mxu0 0.0
    %662 = vmatprep.subr.mxu0 0.0
    %663 = vmatpush1.msra.mxu0 0.0
    %664 = vmatprep.subr.mxu0 0.0
    %665 = vmatpush1.msra.mxu0 0.0
    %666 = vmatprep.subr.mxu0 0.0
    %667 = vmatpush1.msra.mxu0 0.0
    %668 = vmatprep.subr.mxu0 0.0
    %669 = vmatpush1.msra.mxu0 0.0
    %670 = vmatprep.subr.mxu0 0.0
    %671 = vmatpush1.msra.mxu0 0.0
    %672 = vmatprep.subr.mxu0 0.0
    %673 = vmatpush1.msra.mxu0 0.0
    %674 = vmatprep.subr.mxu0 0.0
    %675 = vmatpush1.msra.mxu0 0.0
    %676 = vmatprep.subr.mxu0 0.0
    %677 = vmatpush1.msra.mxu0 0.0
    %678 = vmatprep.subr.mxu0 0.0
    %679 = vmatpush1.msra.mxu0 0.0
    %680 = vmatprep.subr.mxu0 0.0
    %681 = vmatpush1.msra.mxu0 0.0
    %682 = vmatprep.mubr.f32.mxu0 0.0
    %683 = vmatmul.mubr.f32.gmra.mrb[0].mxu0 %v616
    %v684 = vpop.f32.mrb[0].mxu0
    %v685 = vadd.f32 %v612, %v684
    %v686 = vpop.f32.mrb[0].mxu0
    %687 = vdwg.mxu0
    %v688 = vld [vmem:[%s10] sm:$0x1]
    %v690 = vlaneseq
    %v691 = vshrl.u32 %v690, 7
    %v692 = vsub.s32 0, %v691
    %v693 = vrot.slane %v688, %v692
    %v695 = vadd.f32 %v685, %v693
    %v696 = vmax.f32 %v695, 0.0
    %697 = vmatprep.subr.mxu0 0.0
    %698 = vmatpush1.msra.mxu0 %v696
    %699 = vmatprep.subr.mxu0 0.0
    %700 = vmatpush1.msra.mxu0 0.0
    %701 = vmatprep.subr.mxu0 0.0
    %702 = vmatpush1.msra.mxu0 0.0
    %703 = vmatprep.subr.mxu0 0.0
    %704 = vmatpush1.msra.mxu0 0.0
    %705 = vmatprep.subr.mxu0 0.0
    %706 = vmatpush1.msra.mxu0 0.0
    %707 = vmatprep.subr.mxu0 0.0
    %708 = vmatpush1.msra.mxu0 0.0
    %709 = vmatprep.subr.mxu0 0.0
    %710 = vmatpush1.msra.mxu0 0.0
    %711 = vmatprep.subr.mxu0 0.0
    %712 = vmatpush1.msra.mxu0 0.0
    %713 = vmatprep.subr.mxu0 0.0
    %714 = vmatpush1.msra.mxu0 0.0
    %715 = vmatprep.subr.mxu0 0.0
    %716 = vmatpush1.msra.mxu0 0.0
    %717 = vmatprep.subr.mxu0 0.0
    %718 = vmatpush1.msra.mxu0 0.0
    %719 = vmatprep.subr.mxu0 0.0
    %720 = vmatpush1.msra.mxu0 0.0
    %721 = vmatprep.subr.mxu0 0.0
    %722 = vmatpush1.msra.mxu0 0.0
    %723 = vmatprep.subr.mxu0 0.0
    %724 = vmatpush1.msra.mxu0 0.0
    %725 = vmatprep.subr.mxu0 0.0
    %726 = vmatpush1.msra.mxu0 0.0
    %727 = vmatprep.subr.mxu0 0.0
    %728 = vmatpush1.msra.mxu0 0.0
    %729 = vmatprep.subr.mxu0 0.0
    %730 = vmatpush1.msra.mxu0 0.0
    %731 = vmatprep.subr.mxu0 0.0
    %732 = vmatpush1.msra.mxu0 0.0
    %733 = vmatprep.subr.mxu0 0.0
    %734 = vmatpush1.msra.mxu0 0.0
    %735 = vmatprep.subr.mxu0 0.0
    %736 = vmatpush1.msra.mxu0 0.0
    %737 = vmatprep.subr.mxu0 0.0
    %738 = vmatpush1.msra.mxu0 0.0
    %739 = vmatprep.subr.mxu0 0.0
    %740 = vmatpush1.msra.mxu0 0.0
    %741 = vmatprep.subr.mxu0 0.0
    %742 = vmatpush1.msra.mxu0 0.0
    %743 = vmatprep.subr.mxu0 0.0
    %744 = vmatpush1.msra.mxu0 0.0
    %745 = vmatprep.subr.mxu0 0.0
    %746 = vmatpush1.msra.mxu0 0.0
    %747 = vmatprep.subr.mxu0 0.0
    %748 = vmatpush1.msra.mxu0 0.0
    %749 = vmatprep.subr.mxu0 0.0
    %750 = vmatpush1.msra.mxu0 0.0
    %751 = vmatprep.subr.mxu0 0.0
    %752 = vmatpush1.msra.mxu0 0.0
    %753 = vmatprep.subr.mxu0 0.0
    %754 = vmatpush1.msra.mxu0 0.0
    %755 = vmatprep.subr.mxu0 0.0
    %756 = vmatpush1.msra.mxu0 0.0
    %757 = vmatprep.subr.mxu0 0.0
    %758 = vmatpush1.msra.mxu0 0.0
    %759 = vmatprep.subr.mxu0 0.0
    %760 = vmatpush1.msra.mxu0 0.0
    %761 = vmatprep.mubr.f32.mxu0 0.0
    %762 = vmatmul.mubr.f32.gmra.mrb[0].mxu0 %v67
    %v763 = vpop.f32.mrb[0].mxu0
    %v764 = vadd.f32 0.0, %v763
    %v765 = vpop.f32.mrb[0].mxu0
    %766 = vmatprep.mubr.f32.mxu0 0.0
    %767 = vmatmul.mubr.f32.gmra.mrb[0].mxu0 %v70
    %v768 = vpop.f32.mrb[0].mxu0
    %v769 = vadd.f32 0.0, %v768
    %v770 = vpop.f32.mrb[0].mxu0
    %771 = vdwg.mxu0
    %v772 = vmul.f32 %v764, %v459
    %v773 = vmul.f32 %v769, %v460
    %774 = vmatprep.subr.mxu0 0.0
    %775 = vmatpush1.msra.mxu0 %v772
    %776 = vmatprep.subr.mxu0 0.0
    %777 = vmatpush1.msra.mxu0 %v773
    %778 = vmatprep.subr.mxu0 0.0
    %779 = vmatpush1.msra.mxu0 0.0
    %780 = vmatprep.subr.mxu0 0.0
    %781 = vmatpush1.msra.mxu0 0.0
    %782 = vmatprep.subr.mxu0 0.0
    %783 = vmatpush1.msra.mxu0 0.0
    %784 = vmatprep.subr.mxu0 0.0
    %785 = vmatpush1.msra.mxu0 0.0
    %786 = vmatprep.subr.mxu0 0.0
    %787 = vmatpush1.msra.mxu0 0.0
    %788 = vmatprep.subr.mxu0 0.0
    %789 = vmatpush1.msra.mxu0 0.0
    %790 = vmatprep.subr.mxu0 0.0
    %791 = vmatpush1.msra.mxu0 0.0
    %792 = vmatprep.subr.mxu0 0.0
    %793 = vmatpush1.msra.mxu0 0.0
    %794 = vmatprep.subr.mxu0 0.0
    %795 = vmatpush1.msra.mxu0 0.0
    %796 = vmatprep.subr.mxu0 0.0
    %797 = vmatpush1.msra.mxu0 0.0
    %798 = vmatprep.subr.mxu0 0.0
    %799 = vmatpush1.msra.mxu0 0.0
    %800 = vmatprep.subr.mxu0 0.0
    %801 = vmatpush1.msra.mxu0 0.0
    %802 = vmatprep.subr.mxu0 0.0
    %803 = vmatpush1.msra.mxu0 0.0
    %804 = vmatprep.subr.mxu0 0.0
    %805 = vmatpush1.msra.mxu0 0.0
    %806 = vmatprep.subr.mxu0 0.0
    %807 = vmatpush1.msra.mxu0 0.0
    %808 = vmatprep.subr.mxu0 0.0
    %809 = vmatpush1.msra.mxu0 0.0
    %810 = vmatprep.subr.mxu0 0.0
    %811 = vmatpush1.msra.mxu0 0.0
    %812 = vmatprep.subr.mxu0 0.0
    %813 = vmatpush1.msra.mxu0 0.0
    %814 = vmatprep.subr.mxu0 0.0
    %815 = vmatpush1.msra.mxu0 0.0
    %816 = vmatprep.subr.mxu0 0.0
    %817 = vmatpush1.msra.mxu0 0.0
    %818 = vmatprep.subr.mxu0 0.0
    %819 = vmatpush1.msra.mxu0 0.0
    %820 = vmatprep.subr.mxu0 0.0
    %821 = vmatpush1.msra.mxu0 0.0
    %822 = vmatprep.subr.mxu0 0.0
    %823 = vmatpush1.msra.mxu0 0.0
    %824 = vmatprep.subr.mxu0 0.0
    %825 = vmatpush1.msra.mxu0 0.0
    %826 = vmatprep.subr.mxu0 0.0
    %827 = vmatpush1.msra.mxu0 0.0
    %828 = vmatprep.subr.mxu0 0.0
    %829 = vmatpush1.msra.mxu0 0.0
    %830 = vmatprep.subr.mxu0 0.0
    %831 = vmatpush1.msra.mxu0 0.0
    %832 = vmatprep.subr.mxu0 0.0
    %833 = vmatpush1.msra.mxu0 0.0
    %834 = vmatprep.subr.mxu0 0.0
    %835 = vmatpush1.msra.mxu0 0.0
    %836 = vmatprep.subr.mxu0 0.0
    %837 = vmatpush1.msra.mxu0 0.0
    %838 = vmatprep.mubr.f32.mxu0 0.0
    %839 = vmatmul.mubr.f32.gmra.mrb[0].mxu0 %v155
    %v840 = vpop.f32.mrb[0].mxu0
    %v841 = vadd.f32 0.0, %v840
    %v842 = vpop.f32.mrb[0].mxu0
    %843 = vdwg.mxu0
    %v844 = vld [vmem:[%s11] sm:$0xff]
    %v845 = vld [vmem:[%s11 + $0x8] sm:$0xff]
    %v846 = vld [vmem:[%s11 + $0x10] sm:$0xff]
    %v847 = vld [vmem:[%s11 + $0x18] sm:$0xff]
    %v848 = vld [vmem:[%s12] sm:$0xff]
    %v849 = vld [vmem:[%s12 + $0x8] sm:$0xff]
    %v850 = vld [vmem:[%s12 + $0x10] sm:$0xff]
    %v851 = vld [vmem:[%s12 + $0x18] sm:$0xff]
    %v853 = vsel %vm541, %v841, 0
    %855 = vmatprep.subr.mxu0 0.0
    %856 = vmatpush1.msra.mxu0 %v848
    %857 = vmatprep.subr.mxu0 0.0
    %858 = vmatpush1.msra.mxu0 %v849
    %859 = vmatprep.subr.mxu0 0.0
    %860 = vmatpush1.msra.mxu0 %v850
    %861 = vmatprep.subr.mxu0 0.0
    %862 = vmatpush1.msra.mxu0 %v851
    %863 = vmatprep.subr.mxu0 0.0
    %864 = vmatpush1.msra.mxu0 0.0
    %865 = vmatprep.subr.mxu0 0.0
    %866 = vmatpush1.msra.mxu0 0.0
    %867 = vmatprep.subr.mxu0 0.0
    %868 = vmatpush1.msra.mxu0 0.0
    %869 = vmatprep.subr.mxu0 0.0
    %870 = vmatpush1.msra.mxu0 0.0
    %871 = vmatprep.subr.mxu0 0.0
    %872 = vmatpush1.msra.mxu0 0.0
    %873 = vmatprep.subr.mxu0 0.0
    %874 = vmatpush1.msra.mxu0 0.0
    %875 = vmatprep.subr.mxu0 0.0
    %876 = vmatpush1.msra.mxu0 0.0
    %877 = vmatprep.subr.mxu0 0.0
    %878 = vmatpush1.msra.mxu0 0.0
    %879 = vmatprep.subr.mxu0 0.0
    %880 = vmatpush1.msra.mxu0 0.0
    %881 = vmatprep.subr.mxu0 0.0
    %882 = vmatpush1.msra.mxu0 0.0
    %883 = vmatprep.subr.mxu0 0.0
    %884 = vmatpush1.msra.mxu0 0.0
    %885 = vmatprep.subr.mxu0 0.0
    %886 = vmatpush1.msra.mxu0 0.0
    %887 = vmatprep.subr.mxu0 0.0
    %888 = vmatpush1.msra.mxu0 0.0
    %889 = vmatprep.subr.mxu0 0.0
    %890 = vmatpush1.msra.mxu0 0.0
    %891 = vmatprep.subr.mxu0 0.0
    %892 = vmatpush1.msra.mxu0 0.0
    %893 = vmatprep.subr.mxu0 0.0
    %894 = vmatpush1.msra.mxu0 0.0
    %895 = vmatprep.subr.mxu0 0.0
    %896 = vmatpush1.msra.mxu0 0.0
    %897 = vmatprep.subr.mxu0 0.0
    %898 = vmatpush1.msra.mxu0 0.0
    %899 = vmatprep.subr.mxu0 0.0
    %900 = vmatpush1.msra.mxu0 0.0
    %901 = vmatprep.subr.mxu0 0.0
    %902 = vmatpush1.msra.mxu0 0.0
    %903 = vmatprep.subr.mxu0 0.0
    %904 = vmatpush1.msra.mxu0 0.0
    %905 = vmatprep.subr.mxu0 0.0
    %906 = vmatpush1.msra.mxu0 0.0
    %907 = vmatprep.subr.mxu0 0.0
    %908 = vmatpush1.msra.mxu0 0.0
    %909 = vmatprep.subr.mxu0 0.0
    %910 = vmatpush1.msra.mxu0 0.0
    %911 = vmatprep.subr.mxu0 0.0
    %912 = vmatpush1.msra.mxu0 0.0
    %913 = vmatprep.subr.mxu0 0.0
    %914 = vmatpush1.msra.mxu0 0.0
    %915 = vmatprep.subr.mxu0 0.0
    %916 = vmatpush1.msra.mxu0 0.0
    %917 = vmatprep.subr.mxu0 0.0
    %918 = vmatpush1.msra.mxu0 0.0
    %919 = vmatprep.mubr.f32.mxu0 0.0
    %920 = vmatmul.mubr.f32.gmra.mrb[0].mxu0 %v853
    %v921 = vpop.f32.mrb[0].mxu0
    %v922 = vadd.f32 0.0, %v921
    %v923 = vpop.f32.mrb[0].mxu0
    %924 = vdwg.mxu0
    %v926 = vsel %vm541, %v696, 0
    %928 = vmatprep.subr.mxu0 0.0
    %929 = vmatpush1.msra.mxu0 %v844
    %930 = vmatprep.subr.mxu0 0.0
    %931 = vmatpush1.msra.mxu0 %v845
    %932 = vmatprep.subr.mxu0 0.0
    %933 = vmatpush1.msra.mxu0 %v846
    %934 = vmatprep.subr.mxu0 0.0
    %935 = vmatpush1.msra.mxu0 %v847
    %936 = vmatprep.subr.mxu0 0.0
    %937 = vmatpush1.msra.mxu0 0.0
    %938 = vmatprep.subr.mxu0 0.0
    %939 = vmatpush1.msra.mxu0 0.0
    %940 = vmatprep.subr.mxu0 0.0
    %941 = vmatpush1.msra.mxu0 0.0
    %942 = vmatprep.subr.mxu0 0.0
    %943 = vmatpush1.msra.mxu0 0.0
    %944 = vmatprep.subr.mxu0 0.0
    %945 = vmatpush1.msra.mxu0 0.0
    %946 = vmatprep.subr.mxu0 0.0
    %947 = vmatpush1.msra.mxu0 0.0
    %948 = vmatprep.subr.mxu0 0.0
    %949 = vmatpush1.msra.mxu0 0.0
    %950 = vmatprep.subr.mxu0 0.0
    %951 = vmatpush1.msra.mxu0 0.0
    %952 = vmatprep.subr.mxu0 0.0
    %953 = vmatpush1.msra.mxu0 0.0
    %954 = vmatprep.subr.mxu0 0.0
    %955 = vmatpush1.msra.mxu0 0.0
    %956 = vmatprep.subr.mxu0 0.0
    %957 = vmatpush1.msra.mxu0 0.0
    %958 = vmatprep.subr.mxu0 0.0
    %959 = vmatpush1.msra.mxu0 0.0
    %960 = vmatprep.subr.mxu0 0.0
    %961 = vmatpush1.msra.mxu0 0.0
    %962 = vmatprep.subr.mxu0 0.0
    %963 = vmatpush1.msra.mxu0 0.0
    %964 = vmatprep.subr.mxu0 0.0
    %965 = vmatpush1.msra.mxu0 0.0
    %966 = vmatprep.subr.mxu0 0.0
    %967 = vmatpush1.msra.mxu0 0.0
    %968 = vmatprep.subr.mxu0 0.0
    %969 = vmatpush1.msra.mxu0 0.0
    %970 = vmatprep.subr.mxu0 0.0
    %971 = vmatpush1.msra.mxu0 0.0
    %972 = vmatprep.subr.mxu0 0.0
    %973 = vmatpush1.msra.mxu0 0.0
    %974 = vmatprep.subr.mxu0 0.0
    %975 = vmatpush1.msra.mxu0 0.0
    %976 = vmatprep.subr.mxu0 0.0
    %977 = vmatpush1.msra.mxu0 0.0
    %978 = vmatprep.subr.mxu0 0.0
    %979 = vmatpush1.msra.mxu0 0.0
    %980 = vmatprep.subr.mxu0 0.0
    %981 = vmatpush1.msra.mxu0 0.0
    %982 = vmatprep.subr.mxu0 0.0
    %983 = vmatpush1.msra.mxu0 0.0
    %984 = vmatprep.subr.mxu0 0.0
    %985 = vmatpush1.msra.mxu0 0.0
    %986 = vmatprep.subr.mxu0 0.0
    %987 = vmatpush1.msra.mxu0 0.0
    %988 = vmatprep.subr.mxu0 0.0
    %989 = vmatpush1.msra.mxu0 0.0
    %990 = vmatprep.subr.mxu0 0.0
    %991 = vmatpush1.msra.mxu0 0.0
    %992 = vmatprep.mubr.f32.mxu0 0.0
    %993 = vmatmul.mubr.f32.gmra.mrb[0].mxu0 %v926
    %v994 = vpop.f32.mrb[0].mxu0
    %v995 = vadd.f32 %v922, %v994
    %v996 = vpop.f32.mrb[0].mxu0
    %997 = vdwg.mxu0
    %v998 = vld [vmem:[%s13] sm:$0x1]
    %v1000 = vlaneseq
    %v1001 = vshrl.u32 %v1000, 7
    %v1002 = vsub.s32 0, %v1001
    %v1003 = vrot.slane %v998, %v1002
    %v1005 = vadd.f32 %v995, %v1003
    %1006 = vst.msk [vmem:[#allocation5] sm:$0xff] %vm65, %v1005
    // Predicated region
    $region62: #{tpu_custom_call.1} parent=1 // pred_check
      _
    $region63: #{tpu_custom_call.1} parent=1 // pred_check_branch
      %1008 = sbr.rel (0) target = $region65
    $region64: #{tpu_custom_call.1} parent=1 // pred_region
      %s1010 = ssub.s32 128, 128
      %1011 = vsyncadd [#allocation4], %s1010
      %s1013 = sshll.u32 [#allocation5], 4
      %s1014 = int_to_ptr.vmem [resolvable:$true] %s1013
      %1016 = dma.vmem_to_hbm [thread:$0]  %s1014, 128, %s14, [#allocation4]
    $region65: #{tpu_custom_call.1} parent=1 // pred_fallthru
      _
    // Predicated region
    $region66: #{tpu_custom_call.1} parent=1 // pred_check
      _
    $region67: #{tpu_custom_call.1} parent=1 // pred_check_branch
      %1018 = sbr.rel (0) target = $region69
    $region68: #{tpu_custom_call.1} parent=1 // pred_region
      %1019 = dma.done [#allocation4], 128
    $region69: #{tpu_custom_call.1} parent=1 // pred_fallthru
      _
    %1020 = vsyncpa [#allocation3], 1
    %1021 = vsyncpa [#allocation4], 1

</llo_original>
